<compile_context>
chip_gen: v6e
topology: v6e:2x2x1
jax: 0.10.0
libtpu: 0.0.40
codegen_flags: <defaults>
</compile_context>

<pallas_src>
import jax
import jax.numpy as jnp
import numpy as np
from jax.experimental import pallas as pl
from jax.experimental.pallas import tpu as pltpu


def _pick_tile_n(n_rows, n_classes, itemsize, budget_bytes=12 * 1024 * 1024):
    """Largest row tile (multiple of 8) whose double-buffered input tiles plus
    f32 intermediates fit the VMEM budget."""
    per_row = 2 * n_classes * itemsize + 4 * n_classes * 4 + 16
    tile = budget_bytes // max(per_row, 1)
    tile = max(8, min(int(tile), 2048))
    tile = (tile // 8) * 8
    n_pad = ((n_rows + 7) // 8) * 8
    return max(8, min(tile, n_pad))


def weighted_nll_loss(logits, labels, class_weight):
    """logits: (N, C) float, labels: (N,) int, class_weight: (C,) float -> scalar f32."""
    N, C = logits.shape
    itemsize = jnp.dtype(logits.dtype).itemsize  # bf16 logits accepted as-is (cast in-kernel)
    tile_n = _pick_tile_n(N, C, itemsize)
    num_tiles = pl.cdiv(N, tile_n)

    labels2d = labels.astype(jnp.int32).reshape(N, 1)
    weight2d = class_weight.astype(jnp.float32).reshape(1, C)

    def kernel(x_ref, lbl_ref, w_ref, part_ref):
        i = pl.program_id(0)

        x = x_ref[...].astype(jnp.float32)                           # (tn, C)
        # numerically stable log-softmax pieces; full logp never materialized
        m = jnp.max(x, axis=1, keepdims=True)                        # (tn, 1)
        z = x - m                                                    # (tn, C)
        lse = jnp.log(jnp.sum(jnp.exp(z), axis=1, keepdims=True))    # (tn, 1)

        labels_t = lbl_ref[...]                                      # (tn, 1) int32
        col = jax.lax.broadcasted_iota(jnp.int32, z.shape, 1)        # (tn, C)
        sel = col == labels_t                                        # (tn, C) bool
        picked_z = jnp.sum(jnp.where(sel, z, 0.0), axis=1, keepdims=True)          # (tn, 1)
        picked_w = jnp.sum(jnp.where(sel, w_ref[...], 0.0), axis=1, keepdims=True)  # (tn, 1)

        # Mask rows past N (last tile may be partial; padded rows can hold garbage).
        row = jax.lax.broadcasted_iota(jnp.int32, (tile_n, 1), 0)
        valid = (i * tile_n + row) < N
        contrib = jnp.where(valid, picked_w * (picked_z - lse), 0.0)  # w[y]*logp[y]
        picked_w = jnp.where(valid, picked_w, 0.0)

        num_p = jnp.sum(contrib)     # tile partial of sum_i w[y_i] * logp[i, y_i]
        den_p = jnp.sum(picked_w)    # tile partial of sum_i w[y_i]

        # Lane-dense (1, 8, 128) partial block: sublane 0 = numerator, 1 = denominator.
        sub = jax.lax.broadcasted_iota(jnp.int32, part_ref.shape, 1)
        part_ref[...] = jnp.where(sub == 0, num_p,
                                  jnp.where(sub == 1, den_p, 0.0))

    est_vmem = (2 * tile_n * C * itemsize      # double-buffered logits tiles
                + 2 * tile_n * 4               # double-buffered label tiles
                + 4 * C * 4                    # class weights (resident)
                + 6 * tile_n * C * 4           # f32 intermediates headroom
                + (1 << 20))
    vmem_limit = int(min(max(est_vmem, 16 << 20), 48 << 20))

    partials = pl.pallas_call(
        kernel,
        out_shape=jax.ShapeDtypeStruct((num_tiles, 8, 128), jnp.float32),
        grid_spec=pltpu.PrefetchScalarGridSpec(
            num_scalar_prefetch=0,
            grid=(num_tiles,),
            in_specs=[
                pl.BlockSpec((tile_n, C), lambda i: (i, 0)),   # logits row tile
                pl.BlockSpec((tile_n, 1), lambda i: (i, 0)),   # labels row tile
                pl.BlockSpec((1, C), lambda i: (0, 0)),        # class weights (resident)
            ],
            out_specs=pl.BlockSpec((1, 8, 128), lambda i: (i, 0, 0)),  # per-tile partials
        ),
        compiler_params=pltpu.CompilerParams(
            dimension_semantics=("parallel",),   # independent per-tile partials (2 TCs on v7x)
            vmem_limit_bytes=vmem_limit,
        ),
    )(logits, labels2d, weight2d)

    num = jnp.sum(partials[:, 0, 0])
    den = jnp.sum(partials[:, 1, 0])
    return -(num / den)


def _reference_loss(logits, labels, class_weight):
    logp = jax.nn.log_softmax(logits.astype(jnp.float32), axis=1)
    picked = logp[jnp.arange(logits.shape[0]), labels]
    w = class_weight[labels]
    return -(jnp.sum(w * picked) / jnp.sum(w))


# TODO(synk): `previous_loss` / `fix_preloss` are host-side bookkeeping on the module,
# not part of the forward computation, so they are not implemented in the kernel.

if __name__ == "__main__":
    key = jax.random.PRNGKey(0)
    N, C = 16, 32  # small shapes: batch=16, num_classes=32 (2-D NLLLoss case)

    k1, k2 = jax.random.split(key)
    logits = jax.random.normal(k1, (N, C), dtype=jnp.float32)
    labels = jax.random.randint(k2, (N,), 0, C, dtype=jnp.int32)

    # Deterministic synthetic per-class loss_weight (module loads it from numpy).
    loss_weight = (0.5 + 0.05 * np.arange(C)).astype(np.float32)
    loss_weight = jnp.asarray(loss_weight)

    loss = weighted_nll_loss(logits, labels, loss_weight)
    loss = jax.block_until_ready(loss)

    ref = _reference_loss(logits, labels, loss_weight)
    np.testing.assert_allclose(np.asarray(loss), np.asarray(ref), rtol=1e-5, atol=1e-5)

    print("KERNEL_OK")
</pallas_src>

<mosaic_0001>
module attributes {stable_mosaic.version = 11 : i64} {
  func.func @kernel(%arg0: i32, %arg1: memref<16x32xf32, #tpu.memory_space<vmem>>, %arg2: memref<16x1xi32, #tpu.memory_space<vmem>>, %arg3: memref<1x32xf32, #tpu.memory_space<vmem>>, %arg4: memref<1x8x128xf32, #tpu.memory_space<vmem>>) attributes {dimension_semantics = [#tpu.dimension_semantics<parallel>], iteration_bounds = array<i64: 1>, scalar_prefetch = 0 : i64, scratch_operands = 0 : i64, tpu.core_type = #tpu.core_type<tc>, window_params = [{transform_indices = @transform_0, window_bounds = array<i64: 16, 32>}, {transform_indices = @transform_1, window_bounds = array<i64: 16, 1>}, {pipeline_mode = #tpu.pipeline_mode<synchronous>, transform_indices = @transform_2, window_bounds = array<i64: 1, 32>}, {transform_indices = @transform_3, window_bounds = array<i64: 1, 8, 128>}]} {
    %c0 = arith.constant 0 : index
    %c0_0 = arith.constant 0 : index
    %0 = vector.load %arg1[%c0, %c0_0] : memref<16x32xf32, #tpu.memory_space<vmem>>, vector<16x32xf32>
    %cst = arith.constant dense<0xFF800000> : vector<16xf32>
    %1 = vector.multi_reduction <maximumf>, %0, %cst [1] : vector<16x32xf32> to vector<16xf32>
    %2 = vector.shape_cast %1 : vector<16xf32> to vector<16x1xf32>
    %3 = vector.broadcast %2 : vector<16x1xf32> to vector<16x32xf32>
    %4 = arith.subf %0, %3 : vector<16x32xf32>
    %5 = math.exp %4 : vector<16x32xf32>
    %cst_1 = arith.constant dense<0.000000e+00> : vector<16xf32>
    %6 = vector.multi_reduction <add>, %5, %cst_1 [1] : vector<16x32xf32> to vector<16xf32>
    %7 = vector.shape_cast %6 : vector<16xf32> to vector<16x1xf32>
    %8 = math.log %7 : vector<16x1xf32>
    %c0_2 = arith.constant 0 : index
    %c0_3 = arith.constant 0 : index
    %9 = vector.load %arg2[%c0_2, %c0_3] : memref<16x1xi32, #tpu.memory_space<vmem>>, vector<16x1xi32>
    %10 = tpu.iota {dimensions = array<i32: 1>} : vector<16x32xi32>
    %11 = vector.broadcast %9 : vector<16x1xi32> to vector<16x32xi32>
    %12 = arith.cmpi eq, %10, %11 : vector<16x32xi32>
    %cst_4 = arith.constant 0.000000e+00 : f32
    %13 = vector.broadcast %cst_4 : f32 to vector<16x32xf32>
    %14 = arith.select %12, %4, %13 : vector<16x32xi1>, vector<16x32xf32>
    %cst_5 = arith.constant dense<0.000000e+00> : vector<16xf32>
    %15 = vector.multi_reduction <add>, %14, %cst_5 [1] : vector<16x32xf32> to vector<16xf32>
    %16 = vector.shape_cast %15 : vector<16xf32> to vector<16x1xf32>
    %c0_6 = arith.constant 0 : index
    %c0_7 = arith.constant 0 : index
    %17 = vector.load %arg3[%c0_6, %c0_7] : memref<1x32xf32, #tpu.memory_space<vmem>>, vector<1x32xf32>
    %cst_8 = arith.constant 0.000000e+00 : f32
    %18 = vector.shape_cast %17 : vector<1x32xf32> to vector<1x32xf32>
    %19 = vector.broadcast %18 : vector<1x32xf32> to vector<16x32xf32>
    %20 = vector.broadcast %cst_8 : f32 to vector<16x32xf32>
    %21 = arith.select %12, %19, %20 : vector<16x32xi1>, vector<16x32xf32>
    %cst_9 = arith.constant dense<0.000000e+00> : vector<16xf32>
    %22 = vector.multi_reduction <add>, %21, %cst_9 [1] : vector<16x32xf32> to vector<16xf32>
    %23 = vector.shape_cast %22 : vector<16xf32> to vector<16x1xf32>
    %24 = tpu.iota {dimensions = array<i32: 0>} : vector<16x1xi32>
    %c16_i32 = arith.constant 16 : i32
    %25 = arith.muli %arg0, %c16_i32 : i32
    %26 = vector.broadcast %25 : i32 to vector<16x1xi32>
    %27 = arith.addi %26, %24 : vector<16x1xi32>
    %c16_i32_10 = arith.constant 16 : i32
    %28 = vector.broadcast %c16_i32_10 : i32 to vector<16x1xi32>
    %29 = arith.cmpi slt, %27, %28 : vector<16x1xi32>
    %30 = arith.subf %16, %8 : vector<16x1xf32>
    %31 = arith.mulf %23, %30 : vector<16x1xf32>
    %cst_11 = arith.constant 0.000000e+00 : f32
    %32 = vector.broadcast %cst_11 : f32 to vector<16x1xf32>
    %33 = arith.select %29, %31, %32 : vector<16x1xi1>, vector<16x1xf32>
    %cst_12 = arith.constant 0.000000e+00 : f32
    %34 = vector.broadcast %cst_12 : f32 to vector<16x1xf32>
    %35 = arith.select %29, %23, %34 : vector<16x1xi1>, vector<16x1xf32>
    %36 = vector.shape_cast %33 : vector<16x1xf32> to vector<1x16x1xf32>
    %cst_13 = arith.constant dense<0.000000e+00> : vector<1xf32>
    %37 = vector.multi_reduction <add>, %36, %cst_13 [1, 2] : vector<1x16x1xf32> to vector<1xf32>
    %38 = vector.shape_cast %37 : vector<1xf32> to vector<1x1x1xf32>
    %39 = vector.extract %38[0, 0, 0] : f32 from vector<1x1x1xf32>
    %40 = vector.shape_cast %35 : vector<16x1xf32> to vector<1x16x1xf32>
    %cst_14 = arith.constant dense<0.000000e+00> : vector<1xf32>
    %41 = vector.multi_reduction <add>, %40, %cst_14 [1, 2] : vector<1x16x1xf32> to vector<1xf32>
    %42 = vector.shape_cast %41 : vector<1xf32> to vector<1x1x1xf32>
    %43 = vector.extract %42[0, 0, 0] : f32 from vector<1x1x1xf32>
    %44 = tpu.iota {dimensions = array<i32: 1>} : vector<1x8x128xi32>
    %c0_i32 = arith.constant 0 : i32
    %45 = vector.broadcast %c0_i32 : i32 to vector<1x8x128xi32>
    %46 = arith.cmpi eq, %44, %45 : vector<1x8x128xi32>
    %c1_i32 = arith.constant 1 : i32
    %47 = vector.broadcast %c1_i32 : i32 to vector<1x8x128xi32>
    %48 = arith.cmpi eq, %44, %47 : vector<1x8x128xi32>
    %cst_15 = arith.constant 0.000000e+00 : f32
    %49 = vector.broadcast %43 : f32 to vector<1x8x128xf32>
    %50 = vector.broadcast %cst_15 : f32 to vector<1x8x128xf32>
    %51 = arith.select %48, %49, %50 : vector<1x8x128xi1>, vector<1x8x128xf32>
    %52 = vector.broadcast %39 : f32 to vector<1x8x128xf32>
    %53 = arith.select %46, %52, %51 : vector<1x8x128xi1>, vector<1x8x128xf32>
    %c0_16 = arith.constant 0 : index
    %c0_17 = arith.constant 0 : index
    %c0_18 = arith.constant 0 : index
    %54 = vector.load %arg4[%c0_16, %c0_17, %c0_18] : memref<1x8x128xf32, #tpu.memory_space<vmem>>, vector<1x8x128xf32>
    tpu.vector_store %arg4[%c0_16, %c0_17, %c0_18], %53 {strides = array<i32>} : memref<1x8x128xf32, #tpu.memory_space<vmem>>, vector<1x8x128xf32>,
    return
  }
  func.func @transform_0(%arg0: i32) -> (i32, i32) {
    %c0_i32 = arith.constant 0 : i32
    %c0_i32_0 = arith.constant 0 : i32
    return %arg0, %c0_i32 : i32, i32
  }
  func.func @transform_1(%arg0: i32) -> (i32, i32) {
    %c0_i32 = arith.constant 0 : i32
    %c0_i32_0 = arith.constant 0 : i32
    return %arg0, %c0_i32 : i32, i32
  }
  func.func @transform_2(%arg0: i32) -> (i32, i32) {
    %c0_i32 = arith.constant 0 : i32
    %c0_i32_0 = arith.constant 0 : i32
    %c0_i32_1 = arith.constant 0 : i32
    return %c0_i32, %c0_i32_0 : i32, i32
  }
  func.func @transform_3(%arg0: i32) -> (i32, i32, i32) {
    %c0_i32 = arith.constant 0 : i32
    %c0_i32_0 = arith.constant 0 : i32
    %c0_i32_1 = arith.constant 0 : i32
    return %arg0, %c0_i32, %c0_i32_0 : i32, i32, i32
  }
}

</mosaic_0001>

<llo_original>
// kernel: tpu_custom_call.1
$region0: #{tpu_custom_call.1}
  #allocation0 [shape = 'u32[]', space=smem, size = 0x4, offset = 0x4, fixed_abs, tag = 'smem constant byte address 0x4 - core index']
  #allocation1 [shape = 'u32[144,128]{1,0:T(1,128)}', space=vmem, size = 0x12000, scoped, tag = 'internal scratch']
  %s0 = inlined_call_operand.vmem [shape: f32[16,32], index: 0, kind: input, shape index: {}]
  %s1 = inlined_call_operand.vmem [shape: s32[16,1], index: 1, kind: input, shape index: {}]
  %s2 = inlined_call_operand.vmem [shape: f32[1,32], index: 2, kind: input, shape index: {}]
  %s3 = inlined_call_operand.hbm [shape: f32[1,8,128], index: 3, kind: output, shape index: {}]
  %s4 = sld [smem:[#allocation0]]
  $region22: #{tpu_custom_call.1} parent=0
    _
  %s6 = ssub.s32 1, %s4
  %s7 = scalar_select 0, %s6, %s4
  $region1: #{tpu_custom_call.1} parent=0
    #allocation2 [shape = 'u8[4096]{0}', space=vmem, size = 0x1000, scoped, tag = 'output window, operand 0, single buffered']
    #allocation3 [shape = 's32[1]{0}', space=sflag, size = 0x4, scoped, tag = 'scoped memory for tpu_custom_call.1']
    %8 = vsyncpa [#allocation3], 0
    // Predicated region
    $region2: #{tpu_custom_call.1} parent=1 // pred_check
      _
    $region3: #{tpu_custom_call.1} parent=1 // pred_check_branch
      %10 = sbr.rel (0) target = $region5
    $region4: #{tpu_custom_call.1} parent=1 // pred_region
      _
    $region5: #{tpu_custom_call.1} parent=1 // pred_fallthru
      _
    // Predicated region
    $region6: #{tpu_custom_call.1} parent=1 // pred_check
      _
    $region7: #{tpu_custom_call.1} parent=1 // pred_check_branch
      %12 = sbr.rel (0) target = $region9
    $region8: #{tpu_custom_call.1} parent=1 // pred_region
      _
    $region9: #{tpu_custom_call.1} parent=1 // pred_fallthru
      _
    // Predicated region
    $region10: #{tpu_custom_call.1} parent=1 // pred_check
      _
    $region11: #{tpu_custom_call.1} parent=1 // pred_check_branch
      %14 = sbr.rel (0) target = $region13
    $region12: #{tpu_custom_call.1} parent=1 // pred_region
      _
    $region13: #{tpu_custom_call.1} parent=1 // pred_fallthru
      _
    %v15 = vld [vmem:[%s0] sm:$0xff]
    %v16 = vld [vmem:[%s0 + $0x8] sm:$0xff]
    %vm17 = vcmask 261120
    %v18 = vsel %vm17, %v15, -inf
    %19 = vmax.xlane.f32.xlu0 %v18
    %v20 = vpop.xlane.xlu0 %19
    %v21 = vsel %vm17, %v16, -inf
    %22 = vmax.xlane.f32.xlu0 %v21
    %v23 = vpop.xlane.xlu0 %22
    %v24 = vsub.f32 %v15, %v20
    %v25 = vsub.f32 %v16, %v23
    %v26 = vmul.f32 %v24, 1.442695
    %v27 = vpow.pop %v26
    %v28 = vmul.f32 %v25, 1.442695
    %v29 = vpow.pop %v28
    %v30 = vsel %vm17, %v27, 0.0
    %31 = vadd.xlane.f32.xlu0 %v30
    %v32 = vpop.xlane.xlu0 %31
    %v33 = vsel %vm17, %v29, 0.0
    %34 = vadd.xlane.f32.xlu0 %v33
    %v35 = vpop.xlane.xlu0 %34
    %v36 = vlog2.pop %v32
    %v37 = vmul.f32 %v36, 0.6931472
    %v38 = vlog2.pop %v35
    %v39 = vmul.f32 %v38, 0.6931472
    %v40 = vld [vmem:[%s1] sm:$0xff]
    %v41 = vld [vmem:[%s1 + $0x8] sm:$0xff]
    %v42 = vlaneseq
    %v43 = vand.u32 %v42, 127
    %44 = vset.pattern.permute.xlu0 0
    %45 = vperm.xlu0 %44, %v40
    %v46 = vpop.permute.xlu0 %45
    %47 = vset.pattern.permute.xlu0 0
    %48 = vperm.xlu0 %47, %v41
    %v49 = vpop.permute.xlu0 %48
    %vm50 = vcmp.eq.s32.totalorder %v43, %v46
    %vm51 = vcmp.eq.s32.totalorder %v43, %v49
    %v52 = vsel %vm50, %v24, 0.0
    %v53 = vsel %vm51, %v25, 0.0
    %v54 = vsel %vm17, %v52, 0.0
    %55 = vadd.xlane.f32.xlu0 %v54
    %v56 = vpop.xlane.xlu0 %55
    %v57 = vsel %vm17, %v53, 0.0
    %58 = vadd.xlane.f32.xlu0 %v57
    %v59 = vpop.xlane.xlu0 %58
    %v60 = vld [vmem:[%s2] sm:$0x1]
    %v62 = vlaneseq
    %v63 = vshrl.u32 %v62, 7
    %v64 = vsub.s32 0, %v63
    %v65 = vrot.slane %v60, %v64
    %v67 = vsel %vm50, %v65, 0.0
    %v68 = vsel %vm51, %v65, 0.0
    %v69 = vsel %vm17, %v67, 0.0
    %70 = vadd.xlane.f32.xlu0 %v69
    %v71 = vpop.xlane.xlu0 %70
    %v72 = vsel %vm17, %v68, 0.0
    %73 = vadd.xlane.f32.xlu0 %v72
    %v74 = vpop.xlane.xlu0 %73
    %v75 = vlaneseq
    %v76 = vshrl.u32 %v75, 7
    %v77 = vadd.s32 %v76, 8
    %s78 = smul.u32 0, 16
    %v79 = vstv %s78
    %v80 = vadd.s32 %v79, %v76
    %v81 = vadd.s32 %v79, %v77
    %vm82 = vcmp.lt.s32.totalorder %v80, 16
    %vm83 = vcmp.lt.s32.totalorder %v81, 16
    %v84 = vsub.f32 %v56, %v37
    %v85 = vsub.f32 %v59, %v39
    %v86 = vmul.f32 %v71, %v84
    %v87 = vmul.f32 %v74, %v85
    %v88 = vsel %vm82, %v86, 0.0
    %v89 = vsel %vm83, %v87, 0.0
    %v90 = vsel %vm82, %v71, 0.0
    %v91 = vsel %vm83, %v74, 0.0
    %vm92 = vcmask 7168
    %v93 = vsel %vm92, %v88, 0.0
    %v94 = vsel %vm92, %v89, 0.0
    %v95 = vadd.f32 %v93, %v94
    %96 = vadd.xlane.f32.xlu0 %v95
    %v97 = vpop.xlane.xlu0 %96
    %v98 = vrot.slane %v97, 4
    %v99 = vadd.f32 %v97, %v98
    %v100 = vrot.slane %v99, 2
    %v101 = vadd.f32 %v99, %v100
    %v102 = vrot.slane %v101, 1
    %v103 = vadd.f32 %v101, %v102
    %s104 = vtos %v103
    %v105 = vsel %vm92, %v90, 0.0
    %v106 = vsel %vm92, %v91, 0.0
    %v107 = vadd.f32 %v105, %v106
    %108 = vadd.xlane.f32.xlu0 %v107
    %v109 = vpop.xlane.xlu0 %108
    %v110 = vrot.slane %v109, 4
    %v111 = vadd.f32 %v109, %v110
    %v112 = vrot.slane %v111, 2
    %v113 = vadd.f32 %v111, %v112
    %v114 = vrot.slane %v113, 1
    %v115 = vadd.f32 %v113, %v114
    %s116 = vtos %v115
    %vm117 = vcmp.eq.s32.totalorder %v76, 0
    %vm118 = vcmp.eq.s32.totalorder %v76, 1
    %v119 = vstv %s116
    %v120 = vsel %vm118, %v119, 0.0
    %v121 = vstv %s104
    %v122 = vsel %vm117, %v121, %v120
    %123 = vst [vmem:[#allocation2] sm:$0xff] %v122
    // Predicated region
    $region14: #{tpu_custom_call.1} parent=1 // pred_check
      _
    $region15: #{tpu_custom_call.1} parent=1 // pred_check_branch
      %125 = sbr.rel (0) target = $region17
    $region16: #{tpu_custom_call.1} parent=1 // pred_region
      %s127 = ssub.s32 128, 128
      %128 = vsyncadd [#allocation3], %s127
      %s130 = sshll.u32 [#allocation2], 4
      %s131 = int_to_ptr.vmem [resolvable:$true] %s130
      %133 = dma.vmem_to_hbm [thread:$0]  %s131, 128, %s3, [#allocation3]
    $region17: #{tpu_custom_call.1} parent=1 // pred_fallthru
      _
    // Predicated region
    $region18: #{tpu_custom_call.1} parent=1 // pred_check
      _
    $region19: #{tpu_custom_call.1} parent=1 // pred_check_branch
      %135 = sbr.rel (0) target = $region21
    $region20: #{tpu_custom_call.1} parent=1 // pred_region
      %136 = dma.done [#allocation3], 128
    $region21: #{tpu_custom_call.1} parent=1 // pred_fallthru
      _
    %137 = vsyncpa [#allocation3], 1

</llo_original>
